<compile_context>
chip_gen: v7x
topology: tpu7x:2x2x1
jax: 0.10.0
libtpu: 0.0.40
codegen_flags: <defaults>
</compile_context>

<pallas_src>
import functools

import jax
import jax.numpy as jnp
from jax.experimental import pallas as pl
from jax.experimental.pallas import tpu as pltpu

_SELU_ALPHA = 1.6732632423543772848170429916717
_SELU_SCALE = 1.0507009873554804934193349852946
_SELU_SCALE_ALPHA = _SELU_SCALE * _SELU_ALPHA


def _selu(x):
    # Clamp so the unselected exp branch cannot overflow for large positive x.
    # TODO(synk): switch exp(x)-1 -> expm1 once confirmed in the Mosaic lowering set.
    neg = _SELU_SCALE_ALPHA * (jnp.exp(jnp.minimum(x, 0.0)) - 1.0)
    return jnp.where(x > 0, _SELU_SCALE * x, neg)


def _mixer_kernel(x_ref, w1_ref, b1_ref, w2t_ref, b2_ref, o_ref, *, channel_mix_mxu):
    # x_ref:   (TB, C_in, P)            batch tile, NCHW-native (P on lanes)
    # w1_ref:  (C_out, C_in)            [VPU path]  or  (TB*C_out, TB*C_in) block-diag [MXU path]
    # b1_ref:  (1, C_out, 1)  float32
    # w2t_ref: (P, BN)                  patch-mixing weight tile, pre-transposed (z = h @ W2^T)
    # b2_ref:  (1, BN)        float32
    # o_ref:   (TB, C_out, BN)
    tb, c_in, p = x_ref.shape
    c_out = o_ref.shape[1]
    bn = o_ref.shape[2]

    b1 = b1_ref[...]  # hoisted once; broadcast not re-emitted per pass

    # ---- Channel mix: h[b, o, :] = sum_c W1[o, c] * x[b, c, :] ----
    if channel_mix_mxu:
        # One MXU matmul over the whole batch tile via the block-diagonal weight.
        x2d = x_ref[...].astype(jnp.float32).reshape(tb * c_in, p)
        h = jnp.dot(w1_ref[...], x2d, preferred_element_type=jnp.float32)
        h = h.reshape(tb, c_out, p)
    else:
        # Small C_in: C_in broadcast-FMA passes on the VPU (no tiny-K MXU matmuls,
        # no concatenate copy, no per-b live f32 intermediates).
        x = x_ref[...].astype(jnp.float32)          # (tb, c_in, p)
        w1 = w1_ref[...].astype(jnp.float32)        # (c_out, c_in)
        h = x[:, 0:1, :] * w1[:, 0:1][None, :, :]
        for c in range(1, c_in):
            h = h + x[:, c:c + 1, :] * w1[:, c:c + 1][None, :, :]

    # Bias + SELU once on the full tile (f32 epilogue).
    h = _selu(h + b1)

    # ---- Patch mix: one (tb*C_out, P) @ (P, bn) MXU matmul ----
    w2t = w2t_ref[...]
    hq = h.astype(w2t.dtype).reshape(tb * c_out, p)
    z = jnp.dot(hq, w2t, preferred_element_type=jnp.float32)
    z = _selu(z + b2_ref[...])

    # Single lane-dense store of the whole output block.
    o_ref[...] = z.reshape(tb, c_out, bn).astype(o_ref.dtype)


def _vmem_capacity_bytes():
    try:
        cap = int(getattr(pltpu.get_tpu_info(), "vmem_capacity_bytes"))
        if cap > 0:
            return cap
    except Exception:
        pass
    return 64 * 1024 * 1024  # v7x-safe fallback


@functools.partial(jax.jit, static_argnames=("block_b", "block_n", "compute_dtype"))
def mixer_layer_pallas(x_nchw, w1, b1, w2, b2, *, block_b=None, block_n=None,
                       compute_dtype=jnp.bfloat16):
    """MixerLayer forward.

    x_nchw: (B, C_in, H, W); w1: (C_out, C_in) torch layout; b1: (C_out,);
    w2: (P, P) torch layout (out_p, in_p); b2: (P,)  with P = H*W.
    compute_dtype: MXU operand dtype for the patch matmul (h cast + W2^T);
                   None => float32 everywhere. Accumulation / SELU stay f32.
    Returns (B, C_out, H, W) in x_nchw.dtype.
    """
    B, C_in, H, W = x_nchw.shape
    P = H * W
    C_out = w1.shape[0]
    out_dtype = x_nchw.dtype
    if compute_dtype is None:
        compute_dtype = jnp.float32

    # NCHW-native: only free reshapes on the activation path (no HBM transposes).
    x = x_nchw.reshape(B, C_in, P)
    w1f = w1.astype(jnp.float32)
    w2t = w2.T.astype(compute_dtype)                       # weights-only, one-time
    b1r = b1.reshape(1, C_out, 1).astype(jnp.float32)
    b2r = b2.reshape(1, P).astype(jnp.float32)

    x_item = jnp.dtype(x.dtype).itemsize
    out_item = jnp.dtype(out_dtype).itemsize
    wt_item = jnp.dtype(compute_dtype).itemsize

    vmem_cap = _vmem_capacity_bytes()
    vmem_budget = (3 * vmem_cap) // 4                      # headroom for compiler scratch

    # --- (1) Output-patch (N) tiling of the (P, P) weight: keep its resident
    #     footprint within ~1/3 of VMEM (the v7x 64 MiB cliff). block_n % 128 == 0. ---
    auto_n = block_n is None
    if auto_n:
        block_n = P
        if P % 128 == 0:
            w2t_budget = max(vmem_budget // 3, 1)

            def _resident(bn):
                return P * bn * wt_item * (1 if bn == P else 2)

            while _resident(block_n) > w2t_budget and block_n % 256 == 0:
                block_n //= 2
    assert P % block_n == 0 and (block_n == P or block_n % 128 == 0)

    # --- (2) Batch tile: as large as the real VMEM budget allows. Never split
    #     just to create grid steps (v5e/v6e have a single TensorCore). ---
    channel_mix_mxu = C_in > 32
    if block_b is None:
        fixed = (C_out * C_in * 4
                 + P * block_n * wt_item * (1 if block_n == P else 2)
                 + (C_out + P) * 8)
        per_b = (2 * C_in * P * x_item               # double-buffered input block
                 + 2 * C_out * block_n * out_item    # double-buffered output block
                 + C_out * P * 4                     # h (f32)
                 + C_out * P * wt_item               # h cast for the MXU
                 + C_out * block_n * 4)              # z (f32)
        block_b = max(1, (vmem_budget - fixed) // per_b)
    block_b = int(max(1, min(block_b, B)))
    if channel_mix_mxu:
        # Keep the block-diagonal kron(I_block_b, W1) weight small.
        while block_b > 1 and (block_b * C_out) * (block_b * C_in) * 4 > 8 * 1024 * 1024:
            block_b -= 1
    grid_b = int(pl.cdiv(B, block_b))

    # --- (3) Megacore (v7x): if the whole problem fits in one grid step, split N
    #     in two so a second TensorCore gets work. Never shrinks the matmul M;
    #     on single-TC chips it only costs one extra ~0.35us step. ---
    if auto_n and grid_b * (P // block_n) < 2 and block_n == P and P % 256 == 0:
        block_n = P // 2
    n_tiles = P // block_n

    # Channel-mix weight: plain (C_out, C_in) for the VPU path, block-diag for MXU.
    if channel_mix_mxu:
        w1_arg = jnp.kron(jnp.eye(block_b, dtype=jnp.float32), w1f)
    else:
        w1_arg = w1f

    def _wspec(shape, imap, invariant):
        if invariant:  # grid-invariant operand -> single buffer
            return pl.BlockSpec(shape, imap, pipeline_mode=pl.Buffered(1))
        return pl.BlockSpec(shape, imap)

    # Grid: n outer / b inner -> the big W2T tile stays resident across the whole
    # batch; only the small x block is re-fetched per n tile.
    grid = (n_tiles, grid_b)
    in_specs = [
        pl.BlockSpec((block_b, C_in, P), lambda n, b: (b, 0, 0)),
        _wspec(w1_arg.shape, lambda n, b: (0, 0), True),
        _wspec((1, C_out, 1), lambda n, b: (0, 0, 0), True),
        _wspec((P, block_n), lambda n, b: (0, n), n_tiles == 1),
        _wspec((1, block_n), lambda n, b: (0, n), n_tiles == 1),
    ]
    out_spec = pl.BlockSpec((block_b, C_out, block_n), lambda n, b: (b, 0, n))

    cost = pl.CostEstimate(
        flops=int(2 * B * C_out * P * (C_in * n_tiles + P)),
        transcendentals=int(2 * B * C_out * P),
        bytes_accessed=int(n_tiles * B * C_in * P * x_item
                           + B * C_out * P * out_item
                           + w1_arg.size * 4
                           + P * P * wt_item
                           + (C_out + P) * 4),
    )

    out_bcp = pl.pallas_call(
        functools.partial(_mixer_kernel, channel_mix_mxu=channel_mix_mxu),
        out_shape=jax.ShapeDtypeStruct((B, C_out, P), out_dtype),
        grid_spec=pltpu.PrefetchScalarGridSpec(
            num_scalar_prefetch=0,
            grid=grid,
            in_specs=in_specs,
            out_specs=out_spec,
        ),
        compiler_params=pltpu.CompilerParams(
            dimension_semantics=("parallel", "parallel"),
            vmem_limit_bytes=int(vmem_budget),
        ),
        cost_estimate=cost,
    )(x, w1_arg, b1r, w2t, b2r)

    # (B, C_out, P) -> NCHW is a free reshape (no transpose).
    return out_bcp.reshape(B, C_out, H, W)


def mixer_layer_reference(x_nchw, w1, b1, w2, b2):
    """Pure-JAX mirror of the PyTorch MixerLayer forward (for verification)."""
    B, C_in, H, W = x_nchw.shape
    C_out = w1.shape[0]
    # OnChannel: Linear over channels + SELU
    xc = jnp.transpose(x_nchw, (0, 2, 3, 1)).reshape(-1, C_in)
    h = _selu(xc @ w1.T + b1)
    h = jnp.transpose(h.reshape(B, H, W, C_out), (0, 3, 1, 2))
    # OnPatches: Linear over h*w + SELU
    hp = h.reshape(-1, H * W)
    y = _selu(hp @ w2.T + b2)
    return y.reshape(B, C_out, H, W)


if __name__ == "__main__":
    # Small shapes consistent with the module: c == in_dim, h*w == n_patches.
    B, C_in, C_out, H, W = 2, 4, 16, 16, 16
    P = H * W  # n_patches = 256

    key = jax.random.PRNGKey(0)
    k_x, k_w1, k_w2, k_xb = jax.random.split(key, 4)

    x = jax.random.normal(k_x, (B, C_in, H, W), dtype=jnp.float32)
    w1 = jax.random.normal(k_w1, (C_out, C_in), dtype=jnp.float32) / jnp.sqrt(C_in)
    b1 = jnp.full((C_out,), 0.01, dtype=jnp.float32)
    w2 = jax.random.normal(k_w2, (P, P), dtype=jnp.float32) / jnp.sqrt(P)
    b2 = jnp.full((P,), -0.02, dtype=jnp.float32)

    ref = mixer_layer_reference(x, w1, b1, w2, b2)

    # f32 path (tolerance covers TPU default matmul precision on the reference path;
    # semantic errors would be O(1)).
    out_f32 = jax.block_until_ready(
        mixer_layer_pallas(x, w1, b1, w2, b2, compute_dtype=None))
    assert out_f32.shape == (B, C_out, H, W), out_f32.shape
    assert jnp.allclose(out_f32, ref, atol=2e-2, rtol=2e-2), \
        float(jnp.max(jnp.abs(out_f32 - ref)))

    # Default path: bf16 MXU operands for the patch matmul, f32 accumulate + epilogue.
    out_bf16 = jax.block_until_ready(mixer_layer_pallas(x, w1, b1, w2, b2))
    assert out_bf16.shape == (B, C_out, H, W), out_bf16.shape
    assert jnp.allclose(out_bf16, ref, atol=1.5e-1, rtol=1.5e-1), \
        float(jnp.max(jnp.abs(out_bf16 - ref)))

    # Multi-batch-tile path (grid over batch), f32.
    out_bt = jax.block_until_ready(
        mixer_layer_pallas(x, w1, b1, w2, b2, compute_dtype=None, block_b=1))
    assert jnp.allclose(out_bt, ref, atol=2e-2, rtol=2e-2), \
        float(jnp.max(jnp.abs(out_bt - ref)))

    # Block-diagonal (MXU) channel-mix path for larger C_in, f32.
    C_in_big = 40
    xb = jax.random.normal(k_xb, (B, C_in_big, H, W), dtype=jnp.float32)
    w1b = jax.random.normal(k_w1, (C_out, C_in_big), dtype=jnp.float32) / jnp.sqrt(C_in_big)
    refb = mixer_layer_reference(xb, w1b, b1, w2, b2)
    outb = jax.block_until_ready(
        mixer_layer_pallas(xb, w1b, b1, w2, b2, compute_dtype=None))
    assert jnp.allclose(outb, refb, atol=2e-2, rtol=2e-2), \
        float(jnp.max(jnp.abs(outb - refb)))

    print("KERNEL_OK")
</pallas_src>

<mosaic_0001>
module attributes {stable_mosaic.version = 11 : i64} {
  func.func @_mixer_kernel(%arg0: i32, %arg1: i32, %arg2: memref<2x4x256xf32, #tpu.memory_space<vmem>>, %arg3: memref<16x4xf32, #tpu.memory_space<vmem>>, %arg4: memref<1x16x1xf32, #tpu.memory_space<vmem>>, %arg5: memref<256x128xf32, #tpu.memory_space<vmem>>, %arg6: memref<1x128xf32, #tpu.memory_space<vmem>>, %arg7: memref<2x16x128xf32, #tpu.memory_space<vmem>>) attributes {dimension_semantics = [#tpu.dimension_semantics<parallel>, #tpu.dimension_semantics<parallel>], iteration_bounds = array<i64: 2, 1>, scalar_prefetch = 0 : i64, scratch_operands = 0 : i64, tpu.core_type = #tpu.core_type<tc>, window_params = [{transform_indices = @transform_0, window_bounds = array<i64: 2, 4, 256>}, {pipeline_mode = #tpu.pipeline_mode<synchronous>, transform_indices = @transform_1, window_bounds = array<i64: 16, 4>}, {pipeline_mode = #tpu.pipeline_mode<synchronous>, transform_indices = @transform_2, window_bounds = array<i64: 1, 16, 1>}, {transform_indices = @transform_3, window_bounds = array<i64: 256, 128>}, {transform_indices = @transform_4, window_bounds = array<i64: 1, 128>}, {transform_indices = @transform_5, window_bounds = array<i64: 2, 16, 128>}]} {
    %c0 = arith.constant 0 : index
    %c0_0 = arith.constant 0 : index
    %c0_1 = arith.constant 0 : index
    %0 = vector.load %arg4[%c0, %c0_0, %c0_1] : memref<1x16x1xf32, #tpu.memory_space<vmem>>, vector<1x16x1xf32>
    %c0_2 = arith.constant 0 : index
    %c0_3 = arith.constant 0 : index
    %c0_4 = arith.constant 0 : index
    %1 = vector.load %arg2[%c0_2, %c0_3, %c0_4] : memref<2x4x256xf32, #tpu.memory_space<vmem>>, vector<2x4x256xf32>
    %c0_5 = arith.constant 0 : index
    %c0_6 = arith.constant 0 : index
    %2 = vector.load %arg3[%c0_5, %c0_6] : memref<16x4xf32, #tpu.memory_space<vmem>>, vector<16x4xf32>
    %3 = vector.extract_strided_slice %1 {offsets = [0, 0, 0], sizes = [2, 1, 256], strides = [1, 1, 1]} : vector<2x4x256xf32> to vector<2x1x256xf32>
    %4 = vector.extract_strided_slice %2 {offsets = [0, 0], sizes = [16, 1], strides = [1, 1]} : vector<16x4xf32> to vector<16x1xf32>
    %5 = vector.shape_cast %4 : vector<16x1xf32> to vector<1x16x1xf32>
    %6 = vector.broadcast %3 : vector<2x1x256xf32> to vector<2x16x256xf32>
    %7 = vector.broadcast %5 : vector<1x16x1xf32> to vector<2x16x256xf32>
    %8 = arith.mulf %6, %7 : vector<2x16x256xf32>
    %9 = vector.extract_strided_slice %1 {offsets = [0, 1, 0], sizes = [2, 1, 256], strides = [1, 1, 1]} : vector<2x4x256xf32> to vector<2x1x256xf32>
    %10 = vector.extract_strided_slice %2 {offsets = [0, 1], sizes = [16, 1], strides = [1, 1]} : vector<16x4xf32> to vector<16x1xf32>
    %11 = vector.shape_cast %10 : vector<16x1xf32> to vector<1x16x1xf32>
    %12 = vector.broadcast %9 : vector<2x1x256xf32> to vector<2x16x256xf32>
    %13 = vector.broadcast %11 : vector<1x16x1xf32> to vector<2x16x256xf32>
    %14 = arith.mulf %12, %13 : vector<2x16x256xf32>
    %15 = arith.addf %8, %14 : vector<2x16x256xf32>
    %16 = vector.extract_strided_slice %1 {offsets = [0, 2, 0], sizes = [2, 1, 256], strides = [1, 1, 1]} : vector<2x4x256xf32> to vector<2x1x256xf32>
    %17 = vector.extract_strided_slice %2 {offsets = [0, 2], sizes = [16, 1], strides = [1, 1]} : vector<16x4xf32> to vector<16x1xf32>
    %18 = vector.shape_cast %17 : vector<16x1xf32> to vector<1x16x1xf32>
    %19 = vector.broadcast %16 : vector<2x1x256xf32> to vector<2x16x256xf32>
    %20 = vector.broadcast %18 : vector<1x16x1xf32> to vector<2x16x256xf32>
    %21 = arith.mulf %19, %20 : vector<2x16x256xf32>
    %22 = arith.addf %15, %21 : vector<2x16x256xf32>
    %23 = vector.extract_strided_slice %1 {offsets = [0, 3, 0], sizes = [2, 1, 256], strides = [1, 1, 1]} : vector<2x4x256xf32> to vector<2x1x256xf32>
    %24 = vector.extract_strided_slice %2 {offsets = [0, 3], sizes = [16, 1], strides = [1, 1]} : vector<16x4xf32> to vector<16x1xf32>
    %25 = vector.shape_cast %24 : vector<16x1xf32> to vector<1x16x1xf32>
    %26 = vector.broadcast %23 : vector<2x1x256xf32> to vector<2x16x256xf32>
    %27 = vector.broadcast %25 : vector<1x16x1xf32> to vector<2x16x256xf32>
    %28 = arith.mulf %26, %27 : vector<2x16x256xf32>
    %29 = arith.addf %22, %28 : vector<2x16x256xf32>
    %30 = vector.broadcast %0 : vector<1x16x1xf32> to vector<2x16x256xf32>
    %31 = arith.addf %29, %30 : vector<2x16x256xf32>
    %cst = arith.constant 0.000000e+00 : f32
    %32 = vector.broadcast %cst : f32 to vector<2x16x256xf32>
    %33 = arith.minimumf %31, %32 : vector<2x16x256xf32>
    %34 = math.exp %33 : vector<2x16x256xf32>
    %cst_7 = arith.constant 1.000000e+00 : f32
    %35 = vector.broadcast %cst_7 : f32 to vector<2x16x256xf32>
    %36 = arith.subf %34, %35 : vector<2x16x256xf32>
    %cst_8 = arith.constant 1.75809932 : f32
    %37 = vector.broadcast %cst_8 : f32 to vector<2x16x256xf32>
    %38 = arith.mulf %37, %36 : vector<2x16x256xf32>
    %cst_9 = arith.constant 0.000000e+00 : f32
    %39 = vector.broadcast %cst_9 : f32 to vector<2x16x256xf32>
    %40 = arith.cmpf ogt, %31, %39 : vector<2x16x256xf32>
    %cst_10 = arith.constant 1.05070102 : f32
    %41 = vector.broadcast %cst_10 : f32 to vector<2x16x256xf32>
    %42 = arith.mulf %41, %31 : vector<2x16x256xf32>
    %43 = arith.select %40, %42, %38 : vector<2x16x256xi1>, vector<2x16x256xf32>
    %c0_11 = arith.constant 0 : index
    %c0_12 = arith.constant 0 : index
    %44 = vector.load %arg5[%c0_11, %c0_12] : memref<256x128xf32, #tpu.memory_space<vmem>>, vector<256x128xf32>
    %45 = vector.shape_cast %43 : vector<2x16x256xf32> to vector<32x256xf32>
    %cst_13 = arith.constant dense<0.000000e+00> : vector<32x128xf32>
    %46 = tpu.matmul %45, %44, %cst_13 {dimension_numbers = #tpu.dot_dimension_numbers<[1], [0], [0], [1], [0, 0, 1, 1], [], []>} : vector<32x256xf32>, vector<256x128xf32>, vector<32x128xf32> -> vector<32x128xf32>
    %c0_14 = arith.constant 0 : index
    %c0_15 = arith.constant 0 : index
    %47 = vector.load %arg6[%c0_14, %c0_15] : memref<1x128xf32, #tpu.memory_space<vmem>>, vector<1x128xf32>
    %48 = vector.broadcast %47 : vector<1x128xf32> to vector<32x128xf32>
    %49 = arith.addf %46, %48 : vector<32x128xf32>
    %cst_16 = arith.constant 0.000000e+00 : f32
    %50 = vector.broadcast %cst_16 : f32 to vector<32x128xf32>
    %51 = arith.minimumf %49, %50 : vector<32x128xf32>
    %52 = math.exp %51 : vector<32x128xf32>
    %cst_17 = arith.constant 1.000000e+00 : f32
    %53 = vector.broadcast %cst_17 : f32 to vector<32x128xf32>
    %54 = arith.subf %52, %53 : vector<32x128xf32>
    %cst_18 = arith.constant 1.75809932 : f32
    %55 = vector.broadcast %cst_18 : f32 to vector<32x128xf32>
    %56 = arith.mulf %55, %54 : vector<32x128xf32>
    %cst_19 = arith.constant 0.000000e+00 : f32
    %57 = vector.broadcast %cst_19 : f32 to vector<32x128xf32>
    %58 = arith.cmpf ogt, %49, %57 : vector<32x128xf32>
    %cst_20 = arith.constant 1.05070102 : f32
    %59 = vector.broadcast %cst_20 : f32 to vector<32x128xf32>
    %60 = arith.mulf %59, %49 : vector<32x128xf32>
    %61 = arith.select %58, %60, %56 : vector<32x128xi1>, vector<32x128xf32>
    %62 = vector.shape_cast %61 : vector<32x128xf32> to vector<2x16x128xf32>
    %c0_21 = arith.constant 0 : index
    %c0_22 = arith.constant 0 : index
    %c0_23 = arith.constant 0 : index
    %63 = vector.load %arg7[%c0_21, %c0_22, %c0_23] : memref<2x16x128xf32, #tpu.memory_space<vmem>>, vector<2x16x128xf32>
    tpu.vector_store %arg7[%c0_21, %c0_22, %c0_23], %62 {strides = array<i32>} : memref<2x16x128xf32, #tpu.memory_space<vmem>>, vector<2x16x128xf32>,
    return
  }
  func.func @transform_0(%arg0: i32, %arg1: i32) -> (i32, i32, i32) {
    %c0_i32 = arith.constant 0 : i32
    %c0_i32_0 = arith.constant 0 : i32
    %c0_i32_1 = arith.constant 0 : i32
    return %arg1, %c0_i32, %c0_i32_0 : i32, i32, i32
  }
  func.func @transform_1(%arg0: i32, %arg1: i32) -> (i32, i32) {
    %c0_i32 = arith.constant 0 : i32
    %c0_i32_0 = arith.constant 0 : i32
    %c0_i32_1 = arith.constant 0 : i32
    return %c0_i32, %c0_i32_0 : i32, i32
  }
  func.func @transform_2(%arg0: i32, %arg1: i32) -> (i32, i32, i32) {
    %c0_i32 = arith.constant 0 : i32
    %c0_i32_0 = arith.constant 0 : i32
    %c0_i32_1 = arith.constant 0 : i32
    %c0_i32_2 = arith.constant 0 : i32
    return %c0_i32, %c0_i32_0, %c0_i32_1 : i32, i32, i32
  }
  func.func @transform_3(%arg0: i32, %arg1: i32) -> (i32, i32) {
    %c0_i32 = arith.constant 0 : i32
    %c0_i32_0 = arith.constant 0 : i32
    return %c0_i32, %arg0 : i32, i32
  }
  func.func @transform_4(%arg0: i32, %arg1: i32) -> (i32, i32) {
    %c0_i32 = arith.constant 0 : i32
    %c0_i32_0 = arith.constant 0 : i32
    return %c0_i32, %arg0 : i32, i32
  }
  func.func @transform_5(%arg0: i32, %arg1: i32) -> (i32, i32, i32) {
    %c0_i32 = arith.constant 0 : i32
    %c0_i32_0 = arith.constant 0 : i32
    return %arg1, %c0_i32, %arg0 : i32, i32, i32
  }
}

</mosaic_0001>

<llo_original>
// kernel: mixer_layer_pallas.1
$region0: #{mixer_layer_pallas.1}
  #allocation0 [shape = 'u32[]', space=smem, size = 0x4, offset = 0x4, fixed_abs, tag = 'smem constant byte address 0x4 - core index']
  #allocation1 [shape = 'u32[144,128]{1,0:T(1,128)}', space=vmem, size = 0x12000, scoped, tag = 'internal scratch']
  %s0 = inlined_call_operand.vmem [shape: f32[2,4,256], index: 0, kind: input, shape index: {}]
  %s1 = inlined_call_operand.vmem [shape: f32[16,4], index: 1, kind: input, shape index: {}]
  %s2 = inlined_call_operand.vmem [shape: f32[1,16,1], index: 2, kind: input, shape index: {}]
  %s3 = inlined_call_operand.vmem [shape: f32[256,256], index: 3, kind: input, shape index: {}]
  %s4 = inlined_call_operand.vmem [shape: f32[1,256], index: 4, kind: input, shape index: {}]
  %s5 = inlined_call_operand.vmem [shape: f32[2,16,256], index: 5, kind: output, shape index: {}]
  %s6 = sld [smem:[#allocation0]]
  $region125: #{mixer_layer_pallas.1} parent=0
    _
  %s8 = ssub.s32 1, %s6
  %s9 = scalar_select 0, %s8, %s6
  $region1: #{mixer_layer_pallas.1} parent=0
    #allocation2 [shape = 'u8[262144]{0}', space=vmem, size = 0x40000, scoped, tag = 'input window, operand 3']
    #allocation3 [shape = 'u8[32768]{0}', space=vmem, size = 0x8000, scoped, tag = 'output window, operand 0']
    loop: start=0, step=1, limit=4
    $region2: #{mixer_layer_pallas.1} parent=1 // loop_pre_header
      _
    $region3: #{mixer_layer_pallas.1} parent=1 // loop_header
      %s11 = sphi 0, %s15
      %p12 = scmp.ge.s32.totalorder %s11, 4
      %s18 = sphi 0, %s30
      %s19 = sphi 0, %s26
      %s20 = sphi 0, %s18
      %s21 = sphi 0, %s19
      %s22 = sphi 0, %s20
      %s23 = sphi 0, %s21
      %s33 = sphi 0, %s35
      %s36 = sphi 0, %s33
      %s37 = sphi 0, %s36
      %s53 = sphi 0, %s37
      %s57 = sphi 0, %s57
      %s59 = sphi 0, %s57
      %s60 = sphi 0, %s59
      %s74 = sphi 0, %s60
      %s78 = sphi 0, %s78
      %s80 = sphi 0, %s78
      %s81 = sphi 0, %s80
      %s95 = sphi 0, %s81
      %s101 = sphi 0, %s103
      %s104 = sphi 0, %s101
      %s105 = sphi 0, %s104
      %s121 = sphi 0, %s105
      %s127 = sphi 0, %s129
      %s130 = sphi 0, %s127
      %s131 = sphi 0, %s130
      %s147 = sphi 0, %s131
      %s155 = sphi 0, %s157
      %s158 = sphi 0, %s155
      %s159 = sphi 0, %s158
      %s175 = sphi 0, %s159
    $region4: #{mixer_layer_pallas.1} parent=1 // loop_header_branch
      %14 = sbr.rel (%p12) target = $region8
    $region5: #{mixer_layer_pallas.1} parent=1 // loop_body
      %s16 = ssub.s32 %s11, 1
      %s17 = ssub.s32 %s11, 2
      %s24 = sadd.s32 1, %s19
      %p25 = scmp.ge.s32.totalorder %s24, 1
      %s26 = scalar_select %p25, 0, %s24
      %s27 = sadd.s32 1, %s18
      %s28 = scalar_select %p25, %s27, %s18
      %p29 = scmp.ge.s32.totalorder %s28, 2
      %s30 = scalar_select %p29, 0, %s28
      %s31 = ssub.s32 %s19, %s26
      %p32 = scmp.eq.s32.totalorder %s31, 0
      %s34 = sadd.s32 %s33, 1
      %s35 = scalar_select %p32, %s33, %s34
      %p38 = pneg %p32
      %p39 = scmp.eq.s32.totalorder %s11, 1
      %p40 = por %p38, %p39
      %p41 = scmp.ne.s32.totalorder %s33, %s36
      %p42 = scmp.eq.s32.totalorder %s11, 0
      %p43 = por %p41, %p42
      %p44 = scmp.ne.s32.totalorder %s33, %s36
      %p45 = scmp.eq.s32.totalorder %s16, 1
      %p46 = por %p44, %p45
      %p47 = scmp.ne.s32.totalorder %s36, %s37
      %p48 = scmp.eq.s32.totalorder %s16, 0
      %p49 = por %p47, %p48
      %p50 = scmp.ne.s32.totalorder %s36, %s37
      %p51 = scmp.eq.s32.totalorder %s17, 1
      %p52 = por %p50, %p51
      %p54 = scmp.ne.s32.totalorder %s37, %s53
      %p55 = scmp.eq.s32.totalorder %s17, 0
      %p56 = por %p54, %p55
      %s58 = sadd.s32 %s57, 1
      %p61 = scmp.eq.s32.totalorder %s11, 1
      %p62 = scmp.ne.s32.totalorder %s57, %s59
      %p63 = scmp.eq.s32.totalorder %s11, 0
      %p64 = por %p62, %p63
      %p65 = scmp.ne.s32.totalorder %s57, %s59
      %p66 = scmp.eq.s32.totalorder %s16, 1
      %p67 = por %p65, %p66
      %p68 = scmp.ne.s32.totalorder %s59, %s60
      %p69 = scmp.eq.s32.totalorder %s16, 0
      %p70 = por %p68, %p69
      %p71 = scmp.ne.s32.totalorder %s59, %s60
      %p72 = scmp.eq.s32.totalorder %s17, 1
      %p73 = por %p71, %p72
      %p75 = scmp.ne.s32.totalorder %s60, %s74
      %p76 = scmp.eq.s32.totalorder %s17, 0
      %p77 = por %p75, %p76
      %s79 = sadd.s32 %s78, 1
      %p82 = scmp.eq.s32.totalorder %s11, 1
      %p83 = scmp.ne.s32.totalorder %s78, %s80
      %p84 = scmp.eq.s32.totalorder %s11, 0
      %p85 = por %p83, %p84
      %p86 = scmp.ne.s32.totalorder %s78, %s80
      %p87 = scmp.eq.s32.totalorder %s16, 1
      %p88 = por %p86, %p87
      %p89 = scmp.ne.s32.totalorder %s80, %s81
      %p90 = scmp.eq.s32.totalorder %s16, 0
      %p91 = por %p89, %p90
      %p92 = scmp.ne.s32.totalorder %s80, %s81
      %p93 = scmp.eq.s32.totalorder %s17, 1
      %p94 = por %p92, %p93
      %p96 = scmp.ne.s32.totalorder %s81, %s95
      %p97 = scmp.eq.s32.totalorder %s17, 0
      %p98 = por %p96, %p97
      %s99 = ssub.s32 %s18, %s30
      %p100 = scmp.eq.s32.totalorder %s99, 0
      %s102 = sadd.s32 %s101, 1
      %s103 = scalar_select %p100, %s101, %s102
      %p106 = pneg %p100
      %p107 = scmp.eq.s32.totalorder %s11, 1
      %p108 = por %p106, %p107
      %p109 = scmp.ne.s32.totalorder %s101, %s104
      %p110 = scmp.eq.s32.totalorder %s11, 0
      %p111 = por %p109, %p110
      %p112 = scmp.ne.s32.totalorder %s101, %s104
      %p113 = scmp.eq.s32.totalorder %s16, 1
      %p114 = por %p112, %p113
      %p115 = scmp.ne.s32.totalorder %s104, %s105
      %p116 = scmp.eq.s32.totalorder %s16, 0
      %p117 = por %p115, %p116
      %p118 = scmp.ne.s32.totalorder %s104, %s105
      %p119 = scmp.eq.s32.totalorder %s17, 1
      %p120 = por %p118, %p119
      %p122 = scmp.ne.s32.totalorder %s105, %s121
      %p123 = scmp.eq.s32.totalorder %s17, 0
      %p124 = por %p122, %p123
      %s125 = ssub.s32 %s18, %s30
      %p126 = scmp.eq.s32.totalorder %s125, 0
      %s128 = sadd.s32 %s127, 1
      %s129 = scalar_select %p126, %s127, %s128
      %p132 = pneg %p126
      %p133 = scmp.eq.s32.totalorder %s11, 1
      %p134 = por %p132, %p133
      %p135 = scmp.ne.s32.totalorder %s127, %s130
      %p136 = scmp.eq.s32.totalorder %s11, 0
      %p137 = por %p135, %p136
      %p138 = scmp.ne.s32.totalorder %s127, %s130
      %p139 = scmp.eq.s32.totalorder %s16, 1
      %p140 = por %p138, %p139
      %p141 = scmp.ne.s32.totalorder %s130, %s131
      %p142 = scmp.eq.s32.totalorder %s16, 0
      %p143 = por %p141, %p142
      %p144 = scmp.ne.s32.totalorder %s130, %s131
      %p145 = scmp.eq.s32.totalorder %s17, 1
      %p146 = por %p144, %p145
      %p148 = scmp.ne.s32.totalorder %s131, %s147
      %p149 = scmp.eq.s32.totalorder %s17, 0
      %p150 = por %p148, %p149
      %s151 = ssub.s32 %s19, %s26
      %s152 = ssub.s32 %s18, %s30
      %s153 = sor.u32 %s151, %s152
      %p154 = scmp.eq.s32.totalorder %s153, 0
      %s156 = sadd.s32 %s155, 1
      %s157 = scalar_select %p154, %s155, %s156
      %p160 = pneg %p154
      %p161 = scmp.eq.s32.totalorder %s11, 1
      %p162 = por %p160, %p161
      %p163 = scmp.ne.s32.totalorder %s155, %s158
      %p164 = scmp.eq.s32.totalorder %s11, 0
      %p165 = por %p163, %p164
      %p166 = scmp.ne.s32.totalorder %s155, %s158
      %p167 = scmp.eq.s32.totalorder %s16, 1
      %p168 = por %p166, %p167
      %p169 = scmp.ne.s32.totalorder %s158, %s159
      %p170 = scmp.eq.s32.totalorder %s16, 0
      %p171 = por %p169, %p170
      %p172 = scmp.ne.s32.totalorder %s158, %s159
      %p173 = scmp.eq.s32.totalorder %s17, 1
      %p174 = por %p172, %p173
      %p176 = scmp.ne.s32.totalorder %s159, %s175
      %p177 = scmp.eq.s32.totalorder %s17, 0
      %p178 = por %p176, %p177
      %p179 = scmp.le.s32.totalorder 1, %s11
      %p180 = scmp.lt.s32.totalorder %s11, 3
      %p181 = pnand %p179, %p180
      %p182 = pneg %p181
      // Predicated region
      $region9: #{mixer_layer_pallas.1} parent=5 // pred_check
        _
      $region10: #{mixer_layer_pallas.1} parent=5 // pred_check_branch
        %184 = sbr.rel (%p181) target = $region12
      $region11: #{mixer_layer_pallas.1} parent=5 // pred_region
        %s185 = ssub.s32 %s11, 1
        // Predicated region
        $region13: #{mixer_layer_pallas.1} parent=11 // pred_check
          %p186 = pneg %p49
        $region14: #{mixer_layer_pallas.1} parent=11 // pred_check_branch
          %188 = sbr.rel (%p186) target = $region16
        $region15: #{mixer_layer_pallas.1} parent=11 // pred_region
          %s189 = smul.u32 2, %s21
          %p190 = scmp.lt.s32.totalorder %s189, 1
          %s191 = scalar_select %p190, %s189, 1
          %s192 = smul.addr %s191, 2
          %s193 = smul.addr %s192, 4
          %s194 = scalar_lea.vmem %s0, %s193
          %s195 = smul.u32 2, %s21
        $region16: #{mixer_layer_pallas.1} parent=11 // pred_fallthru
          _
        // Predicated region
        $region17: #{mixer_layer_pallas.1} parent=11 // pred_check
          %p196 = pneg %p70
        $region18: #{mixer_layer_pallas.1} parent=11 // pred_check_branch
          %198 = sbr.rel (%p196) target = $region20
        $region19: #{mixer_layer_pallas.1} parent=11 // pred_region
          _
        $region20: #{mixer_layer_pallas.1} parent=11 // pred_fallthru
          _
        // Predicated region
        $region21: #{mixer_layer_pallas.1} parent=11 // pred_check
          %p199 = pneg %p91
        $region22: #{mixer_layer_pallas.1} parent=11 // pred_check_branch
          %201 = sbr.rel (%p199) target = $region24
        $region23: #{mixer_layer_pallas.1} parent=11 // pred_region
          _
        $region24: #{mixer_layer_pallas.1} parent=11 // pred_fallthru
          _
      $region12: #{mixer_layer_pallas.1} parent=5 // pred_fallthru
        _
      %p202 = scmp.lt.s32.totalorder %s11, 2
      // Predicated region
      $region25: #{mixer_layer_pallas.1} parent=5 // pred_check
        %p203 = pneg %p202
      $region26: #{mixer_layer_pallas.1} parent=5 // pred_check_branch
        %205 = sbr.rel (%p203) target = $region28
      $region27: #{mixer_layer_pallas.1} parent=5 // pred_region
        // Predicated region
        $region29: #{mixer_layer_pallas.1} parent=27 // pred_check
          %p206 = pneg %p111
        $region30: #{mixer_layer_pallas.1} parent=27 // pred_check_branch
          %208 = sbr.rel (%p206) target = $region32
        $region31: #{mixer_layer_pallas.1} parent=27 // pred_region
          %s209 = sand.u32 %s101, 1
          %s210 = sand.u32 %s101, 1
          %s211 = smul.addr %s210, 256
          %s212 = scalar_lea.vmem [#allocation2], %s211
          %s213 = smul.addr %s18, 8
          %s214 = scalar_lea.vmem %s3, %s213
          // Predicated region
          $region33: #{mixer_layer_pallas.1} parent=31 // pred_check
            _
          $region34: #{mixer_layer_pallas.1} parent=31 // pred_check_branch
            %216 = sbr.rel (0) target = $region36
          $region35: #{mixer_layer_pallas.1} parent=31 // pred_region
            // Predicated region
            $region37: #{mixer_layer_pallas.1} parent=35 // pred_check
              _
            $region38: #{mixer_layer_pallas.1} parent=35 // pred_check_branch
              %218 = sbr.rel (0) target = $region40
            $region39: #{mixer_layer_pallas.1} parent=35 // pred_region
              // Predicated region
              $region52: #{mixer_layer_pallas.1} parent=39 // pred_check
                _
              $region53: #{mixer_layer_pallas.1} parent=39 // pred_check_branch
                %295 = sbr.rel (0) target = $region55
              $region54: #{mixer_layer_pallas.1} parent=39 // pred_region
                loop: start=0, step=1, limit=1
                $region56: #{mixer_layer_pallas.1} parent=54 // loop_pre_header
                  _
                $region57: #{mixer_layer_pallas.1} parent=54 // loop_header
                  %s297 = sphi 0, %s301
                  %p298 = scmp.ge.s32.totalorder %s297, 1
                  %s302 = sphi %s214, %s214
                  %s303 = sphi %s212, %s212
                $region58: #{mixer_layer_pallas.1} parent=54 // loop_header_branch
                  %300 = sbr.rel (%p298) target = $region62
                $region59: #{mixer_layer_pallas.1} parent=54 // loop_body
                  %v304 = vld [vmem:[%s302] sm:$0xff]
                  %305 = vst [vmem:[%s303] sm:$0xff] %v304
                  %v306 = vld [vmem:[%s302 + $0x10] sm:$0xff]
                  %307 = vst [vmem:[%s303 + $0x8] sm:$0xff] %v306
                  %v308 = vld [vmem:[%s302 + $0x20] sm:$0xff]
                  %309 = vst [vmem:[%s303 + $0x10] sm:$0xff] %v308
                  %v310 = vld [vmem:[%s302 + $0x30] sm:$0xff]
                  %311 = vst [vmem:[%s303 + $0x18] sm:$0xff] %v310
                  %v312 = vld [vmem:[%s302 + $0x40] sm:$0xff]
                  %313 = vst [vmem:[%s303 + $0x20] sm:$0xff] %v312
                  %v314 = vld [vmem:[%s302 + $0x50] sm:$0xff]
                  %315 = vst [vmem:[%s303 + $0x28] sm:$0xff] %v314
                  %v316 = vld [vmem:[%s302 + $0x60] sm:$0xff]
                  %317 = vst [vmem:[%s303 + $0x30] sm:$0xff] %v316
                  %v318 = vld [vmem:[%s302 + $0x70] sm:$0xff]
                  %319 = vst [vmem:[%s303 + $0x38] sm:$0xff] %v318
                  %v320 = vld [vmem:[%s302 + $0x80] sm:$0xff]
                  %321 = vst [vmem:[%s303 + $0x40] sm:$0xff] %v320
                  %v322 = vld [vmem:[%s302 + $0x90] sm:$0xff]
                  %323 = vst [vmem:[%s303 + $0x48] sm:$0xff] %v322
                  %v324 = vld [vmem:[%s302 + $0xa0] sm:$0xff]
                  %325 = vst [vmem:[%s303 + $0x50] sm:$0xff] %v324
                  %v326 = vld [vmem:[%s302 + $0xb0] sm:$0xff]
                  %327 = vst [vmem:[%s303 + $0x58] sm:$0xff] %v326
                  %v328 = vld [vmem:[%s302 + $0xc0] sm:$0xff]
                  %329 = vst [vmem:[%s303 + $0x60] sm:$0xff] %v328
                  %v330 = vld [vmem:[%s302 + $0xd0] sm:$0xff]
                  %331 = vst [vmem:[%s303 + $0x68] sm:$0xff] %v330
                  %v332 = vld [vmem:[%s302 + $0xe0] sm:$0xff]
                  %333 = vst [vmem:[%s303 + $0x70] sm:$0xff] %v332
                  %v334 = vld [vmem:[%s302 + $0xf0] sm:$0xff]
                  %335 = vst [vmem:[%s303 + $0x78] sm:$0xff] %v334
                  %v336 = vld [vmem:[%s302 + $0x100] sm:$0xff]
                  %337 = vst [vmem:[%s303 + $0x80] sm:$0xff] %v336
                  %v338 = vld [vmem:[%s302 + $0x110] sm:$0xff]
                  %339 = vst [vmem:[%s303 + $0x88] sm:$0xff] %v338
                  %v340 = vld [vmem:[%s302 + $0x120] sm:$0xff]
                  %341 = vst [vmem:[%s303 + $0x90] sm:$0xff] %v340
                  %v342 = vld [vmem:[%s302 + $0x130] sm:$0xff]
                  %343 = vst [vmem:[%s303 + $0x98] sm:$0xff] %v342
                  %v344 = vld [vmem:[%s302 + $0x140] sm:$0xff]
                  %345 = vst [vmem:[%s303 + $0xa0] sm:$0xff] %v344
                  %v346 = vld [vmem:[%s302 + $0x150] sm:$0xff]
                  %347 = vst [vmem:[%s303 + $0xa8] sm:$0xff] %v346
                  %v348 = vld [vmem:[%s302 + $0x160] sm:$0xff]
                  %349 = vst [vmem:[%s303 + $0xb0] sm:$0xff] %v348
                  %v350 = vld [vmem:[%s302 + $0x170] sm:$0xff]
                  %351 = vst [vmem:[%s303 + $0xb8] sm:$0xff] %v350
                  %v352 = vld [vmem:[%s302 + $0x180] sm:$0xff]
                  %353 = vst [vmem:[%s303 + $0xc0] sm:$0xff] %v352
                  %v354 = vld [vmem:[%s302 + $0x190] sm:$0xff]
                  %355 = vst [vmem:[%s303 + $0xc8] sm:$0xff] %v354
                  %v356 = vld [vmem:[%s302 + $0x1a0] sm:$0xff]
                  %357 = vst [vmem:[%s303 + $0xd0] sm:$0xff] %v356
                  %v358 = vld [vmem:[%s302 + $0x1b0] sm:$0xff]
                  %359 = vst [vmem:[%s303 + $0xd8] sm:$0xff] %v358
                  %v360 = vld [vmem:[%s302 + $0x1c0] sm:$0xff]
                  %361 = vst [vmem:[%s303 + $0xe0] sm:$0xff] %v360
                  %v362 = vld [vmem:[%s302 + $0x1d0] sm:$0xff]
                  %363 = vst [vmem:[%s303 + $0xe8] sm:$0xff] %v362
                  %v364 = vld [vmem:[%s302 + $0x1e0] sm:$0xff]
                  %365 = vst [vmem:[%s303 + $0xf0] sm:$0xff] %v364
                  %v366 = vld [vmem:[%s302 + $0x1f0] sm:$0xff]
                  %367 = vst [vmem:[%s303 + $0xf8] sm:$0xff] %v366
                $region60: #{mixer_layer_pallas.1} parent=54 // loop_footer
                  %s301 = sadd.s32 1, %s297
                $region61: #{mixer_layer_pallas.1} parent=54 // loop_footer_branch
                  %296 = sbr.rel target = $region57
                $region62: #{mixer_layer_pallas.1} parent=54 // loop_exit
                  _
              $region55: #{mixer_layer_pallas.1} parent=39 // pred_fallthru
                _
              // Predicated region
              $region63: #{mixer_layer_pallas.1} parent=39 // pred_check
                _
              $region64: #{mixer_layer_pallas.1} parent=39 // pred_check_branch
                %369 = sbr.rel target = $region66
              $region65: #{mixer_layer_pallas.1} parent=39 // pred_region
                _
              $region66: #{mixer_layer_pallas.1} parent=39 // pred_fallthru
                _
            $region40: #{mixer_layer_pallas.1} parent=35 // pred_fallthru
              _
            // Predicated region
            $region41: #{mixer_layer_pallas.1} parent=35 // pred_check
              _
            $region42: #{mixer_layer_pallas.1} parent=35 // pred_check_branch
              %220 = sbr.rel target = $region44
            $region43: #{mixer_layer_pallas.1} parent=35 // pred_region
              loop: start=0, step=1, limit=1
              $region45: #{mixer_layer_pallas.1} parent=43 // loop_pre_header
                _
              $region46: #{mixer_layer_pallas.1} parent=43 // loop_header
                %s223 = sphi 0, %s227
                %p224 = scmp.ge.s32.totalorder %s223, 1
                %s228 = sphi %s214, %s214
                %s229 = sphi %s212, %s212
              $region47: #{mixer_layer_pallas.1} parent=43 // loop_header_branch
                %226 = sbr.rel (%p224) target = $region51
              $region48: #{mixer_layer_pallas.1} parent=43 // loop_body
                %v230 = vld [vmem:[%s228] sm:$0xff]
                %231 = vst [vmem:[%s229] sm:$0xff] %v230
                %v232 = vld [vmem:[%s228 + $0x10] sm:$0xff]
                %233 = vst [vmem:[%s229 + $0x8] sm:$0xff] %v232
                %v234 = vld [vmem:[%s228 + $0x20] sm:$0xff]
                %235 = vst [vmem:[%s229 + $0x10] sm:$0xff] %v234
                %v236 = vld [vmem:[%s228 + $0x30] sm:$0xff]
                %237 = vst [vmem:[%s229 + $0x18] sm:$0xff] %v236
                %v238 = vld [vmem:[%s228 + $0x40] sm:$0xff]
                %239 = vst [vmem:[%s229 + $0x20] sm:$0xff] %v238
                %v240 = vld [vmem:[%s228 + $0x50] sm:$0xff]
                %241 = vst [vmem:[%s229 + $0x28] sm:$0xff] %v240
                %v242 = vld [vmem:[%s228 + $0x60] sm:$0xff]
                %243 = vst [vmem:[%s229 + $0x30] sm:$0xff] %v242
                %v244 = vld [vmem:[%s228 + $0x70] sm:$0xff]
                %245 = vst [vmem:[%s229 + $0x38] sm:$0xff] %v244
                %v246 = vld [vmem:[%s228 + $0x80] sm:$0xff]
                %247 = vst [vmem:[%s229 + $0x40] sm:$0xff] %v246
                %v248 = vld [vmem:[%s228 + $0x90] sm:$0xff]
                %249 = vst [vmem:[%s229 + $0x48] sm:$0xff] %v248
                %v250 = vld [vmem:[%s228 + $0xa0] sm:$0xff]
                %251 = vst [vmem:[%s229 + $0x50] sm:$0xff] %v250
                %v252 = vld [vmem:[%s228 + $0xb0] sm:$0xff]
                %253 = vst [vmem:[%s229 + $0x58] sm:$0xff] %v252
                %v254 = vld [vmem:[%s228 + $0xc0] sm:$0xff]
                %255 = vst [vmem:[%s229 + $0x60] sm:$0xff] %v254
                %v256 = vld [vmem:[%s228 + $0xd0] sm:$0xff]
                %257 = vst [vmem:[%s229 + $0x68] sm:$0xff] %v256
                %v258 = vld [vmem:[%s228 + $0xe0] sm:$0xff]
                %259 = vst [vmem:[%s229 + $0x70] sm:$0xff] %v258
                %v260 = vld [vmem:[%s228 + $0xf0] sm:$0xff]
                %261 = vst [vmem:[%s229 + $0x78] sm:$0xff] %v260
                %v262 = vld [vmem:[%s228 + $0x100] sm:$0xff]
                %263 = vst [vmem:[%s229 + $0x80] sm:$0xff] %v262
                %v264 = vld [vmem:[%s228 + $0x110] sm:$0xff]
                %265 = vst [vmem:[%s229 + $0x88] sm:$0xff] %v264
                %v266 = vld [vmem:[%s228 + $0x120] sm:$0xff]
                %267 = vst [vmem:[%s229 + $0x90] sm:$0xff] %v266
                %v268 = vld [vmem:[%s228 + $0x130] sm:$0xff]
                %269 = vst [vmem:[%s229 + $0x98] sm:$0xff] %v268
                %v270 = vld [vmem:[%s228 + $0x140] sm:$0xff]
                %271 = vst [vmem:[%s229 + $0xa0] sm:$0xff] %v270
                %v272 = vld [vmem:[%s228 + $0x150] sm:$0xff]
                %273 = vst [vmem:[%s229 + $0xa8] sm:$0xff] %v272
                %v274 = vld [vmem:[%s228 + $0x160] sm:$0xff]
                %275 = vst [vmem:[%s229 + $0xb0] sm:$0xff] %v274
                %v276 = vld [vmem:[%s228 + $0x170] sm:$0xff]
                %277 = vst [vmem:[%s229 + $0xb8] sm:$0xff] %v276
                %v278 = vld [vmem:[%s228 + $0x180] sm:$0xff]
                %279 = vst [vmem:[%s229 + $0xc0] sm:$0xff] %v278
                %v280 = vld [vmem:[%s228 + $0x190] sm:$0xff]
                %281 = vst [vmem:[%s229 + $0xc8] sm:$0xff] %v280
                %v282 = vld [vmem:[%s228 + $0x1a0] sm:$0xff]
                %283 = vst [vmem:[%s229 + $0xd0] sm:$0xff] %v282
                %v284 = vld [vmem:[%s228 + $0x1b0] sm:$0xff]
                %285 = vst [vmem:[%s229 + $0xd8] sm:$0xff] %v284
                %v286 = vld [vmem:[%s228 + $0x1c0] sm:$0xff]
                %287 = vst [vmem:[%s229 + $0xe0] sm:$0xff] %v286
                %v288 = vld [vmem:[%s228 + $0x1d0] sm:$0xff]
                %289 = vst [vmem:[%s229 + $0xe8] sm:$0xff] %v288
                %v290 = vld [vmem:[%s228 + $0x1e0] sm:$0xff]
                %291 = vst [vmem:[%s229 + $0xf0] sm:$0xff] %v290
                %v292 = vld [vmem:[%s228 + $0x1f0] sm:$0xff]
                %293 = vst [vmem:[%s229 + $0xf8] sm:$0xff] %v292
              $region49: #{mixer_layer_pallas.1} parent=43 // loop_footer
                %s227 = sadd.s32 1, %s223
              $region50: #{mixer_layer_pallas.1} parent=43 // loop_footer_branch
                %222 = sbr.rel target = $region46
              $region51: #{mixer_layer_pallas.1} parent=43 // loop_exit
                _
            $region44: #{mixer_layer_pallas.1} parent=35 // pred_fallthru
              _
          $region36: #{mixer_layer_pallas.1} parent=31 // pred_fallthru
            _
          %370 = vnop
        $region32: #{mixer_layer_pallas.1} parent=27 // pred_fallthru
          _
        // Predicated region
        $region67: #{mixer_layer_pallas.1} parent=27 // pred_check
          %p371 = pneg %p137
        $region68: #{mixer_layer_pallas.1} parent=27 // pred_check_branch
          %373 = sbr.rel (%p371) target = $region70
        $region69: #{mixer_layer_pallas.1} parent=27 // pred_region
          %p374 = scmp.lt.s32.totalorder %s18, 1
          %s375 = scalar_select %p374, %s18, 1
          %s376 = scalar_lea.vmem %s4, %s375
        $region70: #{mixer_layer_pallas.1} parent=27 // pred_fallthru
          _
      $region28: #{mixer_layer_pallas.1} parent=5 // pred_fallthru
        _
      %p377 = scmp.le.s32.totalorder 1, %s11
      %p378 = scmp.lt.s32.totalorder %s11, 3
      %p379 = pnand %p377, %p378
      %p380 = pneg %p379
      // Predicated region
      $region71: #{mixer_layer_pallas.1} parent=5 // pred_check
        _
      $region72: #{mixer_layer_pallas.1} parent=5 // pred_check_branch
        %382 = sbr.rel (%p379) target = $region74
      $region73: #{mixer_layer_pallas.1} parent=5 // pred_region
        %s383 = ssub.s32 %s11, 1
        %s384 = sand.u32 %s104, 1
        %s385 = sand.u32 %s104, 1
        %s386 = smul.addr %s385, 256
        %s387 = scalar_lea.vmem [#allocation2], %s386
        // Predicated region
        $region75: #{mixer_layer_pallas.1} parent=73 // pred_check
          %p388 = pneg %p117
        $region76: #{mixer_layer_pallas.1} parent=73 // pred_check_branch
          %390 = sbr.rel (%p388) target = $region78
        $region77: #{mixer_layer_pallas.1} parent=73 // pred_region
          _
        $region78: #{mixer_layer_pallas.1} parent=73 // pred_fallthru
          _
        %s391 = smul.u32 2, %s21
        %p392 = scmp.lt.s32.totalorder %s391, 1
        %s393 = scalar_select %p392, %s391, 1
        %s394 = smul.addr %s393, 2
        %s395 = smul.addr %s394, 4
        %s396 = scalar_lea.vmem %s0, %s395
        %p397 = pneg %p49
        %p398 = pneg %p46
        %p399 = pneg %p70
        %p400 = pneg %p67
        %p401 = pneg %p91
        %p402 = pneg %p88
        %s403 = sand.u32 %s104, 1
        %s404 = sand.u32 %s104, 1
        %s405 = smul.addr %s404, 256
        %s406 = scalar_lea.vmem [#allocation2], %s405
        %p407 = pneg %p117
        %p408 = pneg %p114
        %p409 = scmp.lt.s32.totalorder %s20, 1
        %s410 = scalar_select %p409, %s20, 1
        %s411 = scalar_lea.vmem %s4, %s410
        %p412 = pneg %p143
        %p413 = pneg %p140
        %p414 = pneg %p171
        %p415 = pneg %p168
        %s416 = sand.u32 %s158, 1
        %s417 = sand.u32 %s158, 1
        %s418 = smul.addr %s417, 32
        %s419 = scalar_lea.vmem [#allocation3], %s418
        %s420 = smul.u32 2, %s21
        %p421 = scmp.lt.s32.totalorder %s420, 1
        %s422 = scalar_select %p421, %s420, 1
        %s423 = smul.addr %s422, 2
        %s424 = smul.addr %s423, 4
        %s425 = scalar_lea.vmem %s0, %s424
        %s426 = smul.u32 2, %s21
        %p427 = scmp.lt.s32.totalorder %s20, 1
        %s428 = scalar_select %p427, %s20, 1
        %s429 = scalar_lea.vmem %s4, %s428
        %s430 = smul.u32 2, %s21
        %v431 = vld [vmem:[%s2] sm:$0xff]
        %v432 = vld [vmem:[%s2 + $0x8] sm:$0xff]
        %v433 = vld [vmem:[%s425] sm:$0xff]
        %v434 = vld [vmem:[%s425 + $0x8] sm:$0xff]
        %v435 = vld [vmem:[%s1] sm:$0xff]
        %v436 = vld [vmem:[%s1 + $0x8] sm:$0xff]
        %v439 = vlaneseq
        %v440 = vshrl.u32 %v439, 7
        %v441 = vsub.s32 0, %v440
        %v442 = vrot.slane %v433, %v441
        %v443 = vlaneseq
        %v444 = vshrl.u32 %v443, 7
        %v445 = vsub.s32 4, %v444
        %v446 = vrot.slane %v433, %v445
        %v447 = vlaneseq
        %v448 = vshrl.u32 %v447, 7
        %v449 = vsub.s32 0, %v448
        %v450 = vrot.slane %v434, %v449
        %v451 = vlaneseq
        %v452 = vshrl.u32 %v451, 7
        %v453 = vsub.s32 4, %v452
        %v454 = vrot.slane %v434, %v453
        %v459 = vlaneseq
        %v460 = vshrl.u32 %v459, 7
        %v461 = vsub.s32 0, %v460
        %v462 = vrot.slane %v442, %v461
        %v463 = vlaneseq
        %v464 = vshrl.u32 %v463, 7
        %v465 = vsub.s32 0, %v464
        %v466 = vrot.slane %v446, %v465
        %v467 = vlaneseq
        %v468 = vshrl.u32 %v467, 7
        %v469 = vsub.s32 0, %v468
        %v470 = vrot.slane %v450, %v469
        %v471 = vlaneseq
        %v472 = vshrl.u32 %v471, 7
        %v473 = vsub.s32 0, %v472
        %v474 = vrot.slane %v454, %v473
        %476 = vset.pattern.permute.xlu0 0
        %477 = vperm.xlu0 %476, %v435
        %v478 = vpop.permute.xlu0 %477
        %481 = vset.pattern.permute.xlu0 0
        %482 = vperm.xlu0 %481, %v436
        %v483 = vpop.permute.xlu0 %482
        %v485 = vmul.f32 %v462, %v478
        %v486 = vmul.f32 %v466, %v478
        %v487 = vmul.f32 %v462, %v483
        %v488 = vmul.f32 %v466, %v483
        %v489 = vmul.f32 %v470, %v478
        %v490 = vmul.f32 %v474, %v478
        %v491 = vmul.f32 %v470, %v483
        %v492 = vmul.f32 %v474, %v483
        %v493 = vlaneseq
        %v494 = vshrl.u32 %v493, 7
        %v495 = vsub.s32 1, %v494
        %v496 = vrot.slane %v433, %v495
        %v497 = vlaneseq
        %v498 = vshrl.u32 %v497, 7
        %v499 = vsub.s32 5, %v498
        %v500 = vrot.slane %v433, %v499
        %v501 = vlaneseq
        %v502 = vshrl.u32 %v501, 7
        %v503 = vsub.s32 1, %v502
        %v504 = vrot.slane %v434, %v503
        %v505 = vlaneseq
        %v506 = vshrl.u32 %v505, 7
        %v507 = vsub.s32 5, %v506
        %v508 = vrot.slane %v434, %v507
        %v513 = vlaneseq
        %v514 = vshrl.u32 %v513, 7
        %v515 = vsub.s32 1, %v514
        %v516 = vrot.slane %v496, %v515
        %v517 = vlaneseq
        %v518 = vshrl.u32 %v517, 7
        %v519 = vsub.s32 1, %v518
        %v520 = vrot.slane %v500, %v519
        %v521 = vlaneseq
        %v522 = vshrl.u32 %v521, 7
        %v523 = vsub.s32 1, %v522
        %v524 = vrot.slane %v504, %v523
        %v525 = vlaneseq
        %v526 = vshrl.u32 %v525, 7
        %v527 = vsub.s32 1, %v526
        %v528 = vrot.slane %v508, %v527
        %529 = vset.pattern.permute.xlu0 1
        %530 = vperm.xlu0 %529, %v435
        %v531 = vpop.permute.xlu0 %530
        %533 = vset.pattern.permute.xlu0 1
        %534 = vperm.xlu0 %533, %v436
        %v535 = vpop.permute.xlu0 %534
        %v537 = vmul.f32 %v516, %v531
        %v538 = vmul.f32 %v520, %v531
        %v539 = vmul.f32 %v516, %v535
        %v540 = vmul.f32 %v520, %v535
        %v541 = vmul.f32 %v524, %v531
        %v542 = vmul.f32 %v528, %v531
        %v543 = vmul.f32 %v524, %v535
        %v544 = vmul.f32 %v528, %v535
        %v545 = vadd.f32 %v485, %v537
        %v546 = vadd.f32 %v486, %v538
        %v547 = vadd.f32 %v487, %v539
        %v548 = vadd.f32 %v488, %v540
        %v549 = vadd.f32 %v489, %v541
        %v550 = vadd.f32 %v490, %v542
        %v551 = vadd.f32 %v491, %v543
        %v552 = vadd.f32 %v492, %v544
        %v553 = vlaneseq
        %v554 = vshrl.u32 %v553, 7
        %v555 = vsub.s32 2, %v554
        %v556 = vrot.slane %v433, %v555
        %v557 = vlaneseq
        %v558 = vshrl.u32 %v557, 7
        %v559 = vsub.s32 6, %v558
        %v560 = vrot.slane %v433, %v559
        %v561 = vlaneseq
        %v562 = vshrl.u32 %v561, 7
        %v563 = vsub.s32 2, %v562
        %v564 = vrot.slane %v434, %v563
        %v565 = vlaneseq
        %v566 = vshrl.u32 %v565, 7
        %v567 = vsub.s32 6, %v566
        %v568 = vrot.slane %v434, %v567
        %v573 = vlaneseq
        %v574 = vshrl.u32 %v573, 7
        %v575 = vsub.s32 2, %v574
        %v576 = vrot.slane %v556, %v575
        %v577 = vlaneseq
        %v578 = vshrl.u32 %v577, 7
        %v579 = vsub.s32 2, %v578
        %v580 = vrot.slane %v560, %v579
        %v581 = vlaneseq
        %v582 = vshrl.u32 %v581, 7
        %v583 = vsub.s32 2, %v582
        %v584 = vrot.slane %v564, %v583
        %v585 = vlaneseq
        %v586 = vshrl.u32 %v585, 7
        %v587 = vsub.s32 2, %v586
        %v588 = vrot.slane %v568, %v587
        %589 = vset.pattern.permute.xlu0 2
        %590 = vperm.xlu0 %589, %v435
        %v591 = vpop.permute.xlu0 %590
        %593 = vset.pattern.permute.xlu0 2
        %594 = vperm.xlu0 %593, %v436
        %v595 = vpop.permute.xlu0 %594
        %v597 = vmul.f32 %v576, %v591
        %v598 = vmul.f32 %v580, %v591
        %v599 = vmul.f32 %v576, %v595
        %v600 = vmul.f32 %v580, %v595
        %v601 = vmul.f32 %v584, %v591
        %v602 = vmul.f32 %v588, %v591
        %v603 = vmul.f32 %v584, %v595
        %v604 = vmul.f32 %v588, %v595
        %v605 = vadd.f32 %v545, %v597
        %v606 = vadd.f32 %v546, %v598
        %v607 = vadd.f32 %v547, %v599
        %v608 = vadd.f32 %v548, %v600
        %v609 = vadd.f32 %v549, %v601
        %v610 = vadd.f32 %v550, %v602
        %v611 = vadd.f32 %v551, %v603
        %v612 = vadd.f32 %v552, %v604
        %v613 = vlaneseq
        %v614 = vshrl.u32 %v613, 7
        %v615 = vsub.s32 3, %v614
        %v616 = vrot.slane %v433, %v615
        %v617 = vlaneseq
        %v618 = vshrl.u32 %v617, 7
        %v619 = vsub.s32 7, %v618
        %v620 = vrot.slane %v433, %v619
        %v621 = vlaneseq
        %v622 = vshrl.u32 %v621, 7
        %v623 = vsub.s32 3, %v622
        %v624 = vrot.slane %v434, %v623
        %v625 = vlaneseq
        %v626 = vshrl.u32 %v625, 7
        %v627 = vsub.s32 7, %v626
        %v628 = vrot.slane %v434, %v627
        %v633 = vlaneseq
        %v634 = vshrl.u32 %v633, 7
        %v635 = vsub.s32 3, %v634
        %v636 = vrot.slane %v616, %v635
        %v637 = vlaneseq
        %v638 = vshrl.u32 %v637, 7
        %v639 = vsub.s32 3, %v638
        %v640 = vrot.slane %v620, %v639
        %v641 = vlaneseq
        %v642 = vshrl.u32 %v641, 7
        %v643 = vsub.s32 3, %v642
        %v644 = vrot.slane %v624, %v643
        %v645 = vlaneseq
        %v646 = vshrl.u32 %v645, 7
        %v647 = vsub.s32 3, %v646
        %v648 = vrot.slane %v628, %v647
        %649 = vset.pattern.permute.xlu0 3
        %650 = vperm.xlu0 %649, %v435
        %v651 = vpop.permute.xlu0 %650
        %653 = vset.pattern.permute.xlu0 3
        %654 = vperm.xlu0 %653, %v436
        %v655 = vpop.permute.xlu0 %654
        %v657 = vmul.f32 %v636, %v651
        %v658 = vmul.f32 %v640, %v651
        %v659 = vmul.f32 %v636, %v655
        %v660 = vmul.f32 %v640, %v655
        %v661 = vmul.f32 %v644, %v651
        %v662 = vmul.f32 %v648, %v651
        %v663 = vmul.f32 %v644, %v655
        %v664 = vmul.f32 %v648, %v655
        %v665 = vadd.f32 %v605, %v657
        %v666 = vadd.f32 %v606, %v658
        %v667 = vadd.f32 %v607, %v659
        %v668 = vadd.f32 %v608, %v660
        %v669 = vadd.f32 %v609, %v661
        %v670 = vadd.f32 %v610, %v662
        %v671 = vadd.f32 %v611, %v663
        %v672 = vadd.f32 %v612, %v664
        %674 = vset.pattern.permute.xlu0 0
        %675 = vperm.xlu0 %674, %v431
        %v676 = vpop.permute.xlu0 %675
        %679 = vset.pattern.permute.xlu0 0
        %680 = vperm.xlu0 %679, %v432
        %v681 = vpop.permute.xlu0 %680
        %v683 = vadd.f32 %v665, %v676
        %v684 = vadd.f32 %v666, %v676
        %v685 = vadd.f32 %v667, %v681
        %v686 = vadd.f32 %v668, %v681
        %v687 = vadd.f32 %v669, %v676
        %v688 = vadd.f32 %v670, %v676
        %v689 = vadd.f32 %v671, %v681
        %v690 = vadd.f32 %v672, %v681
        %v691 = vmin.f32 %v683, 0.0
        %v692 = vmin.f32 %v684, 0.0
        %v693 = vmin.f32 %v685, 0.0
        %v694 = vmin.f32 %v686, 0.0
        %v695 = vmin.f32 %v687, 0.0
        %v696 = vmin.f32 %v688, 0.0
        %v697 = vmin.f32 %v689, 0.0
        %v698 = vmin.f32 %v690, 0.0
        %v699 = vmul.f32 %v691, 1.442695
        %v700 = vpow.pop %v699
        %v701 = vmul.f32 %v692, 1.442695
        %v702 = vpow.pop %v701
        %v703 = vmul.f32 %v693, 1.442695
        %v704 = vpow.pop %v703
        %v705 = vmul.f32 %v694, 1.442695
        %v706 = vpow.pop %v705
        %v707 = vmul.f32 %v695, 1.442695
        %v708 = vpow.pop %v707
        %v709 = vmul.f32 %v696, 1.442695
        %v710 = vpow.pop %v709
        %v711 = vmul.f32 %v697, 1.442695
        %v712 = vpow.pop %v711
        %v713 = vmul.f32 %v698, 1.442695
        %v714 = vpow.pop %v713
        %v715 = vsub.f32 %v700, 1.0
        %v716 = vsub.f32 %v702, 1.0
        %v717 = vsub.f32 %v704, 1.0
        %v718 = vsub.f32 %v706, 1.0
        %v719 = vsub.f32 %v708, 1.0
        %v720 = vsub.f32 %v710, 1.0
        %v721 = vsub.f32 %v712, 1.0
        %v722 = vsub.f32 %v714, 1.0
        %v723 = vmul.f32 %v715, 1.7580993
        %v724 = vmul.f32 %v716, 1.7580993
        %v725 = vmul.f32 %v717, 1.7580993
        %v726 = vmul.f32 %v718, 1.7580993
        %v727 = vmul.f32 %v719, 1.7580993
        %v728 = vmul.f32 %v720, 1.7580993
        %v729 = vmul.f32 %v721, 1.7580993
        %v730 = vmul.f32 %v722, 1.7580993
        %vm731 = vcmp.gt.f32.partialorder %v683, 0.0
        %vm732 = vcmp.gt.f32.partialorder %v684, 0.0
        %vm733 = vcmp.gt.f32.partialorder %v685, 0.0
        %vm734 = vcmp.gt.f32.partialorder %v686, 0.0
        %vm735 = vcmp.gt.f32.partialorder %v687, 0.0
        %vm736 = vcmp.gt.f32.partialorder %v688, 0.0
        %vm737 = vcmp.gt.f32.partialorder %v689, 0.0
        %vm738 = vcmp.gt.f32.partialorder %v690, 0.0
        %v739 = vmul.f32 %v683, 1.050701
        %v740 = vmul.f32 %v684, 1.050701
        %v741 = vmul.f32 %v685, 1.050701
        %v742 = vmul.f32 %v686, 1.050701
        %v743 = vmul.f32 %v687, 1.050701
        %v744 = vmul.f32 %v688, 1.050701
        %v745 = vmul.f32 %v689, 1.050701
        %v746 = vmul.f32 %v690, 1.050701
        %v747 = vsel %vm731, %v739, %v723
        %v748 = vsel %vm732, %v740, %v724
        %v749 = vsel %vm733, %v741, %v725
        %v750 = vsel %vm734, %v742, %v726
        %v751 = vsel %vm735, %v743, %v727
        %v752 = vsel %vm736, %v744, %v728
        %v753 = vsel %vm737, %v745, %v729
        %v754 = vsel %vm738, %v746, %v730
        %v755 = vld [vmem:[%s387] sm:$0xff]
        %v756 = vld [vmem:[%s387 + $0x8] sm:$0xff]
        %v757 = vld [vmem:[%s387 + $0x10] sm:$0xff]
        %v758 = vld [vmem:[%s387 + $0x18] sm:$0xff]
        %v759 = vld [vmem:[%s387 + $0x20] sm:$0xff]
        %v760 = vld [vmem:[%s387 + $0x28] sm:$0xff]
        %v761 = vld [vmem:[%s387 + $0x30] sm:$0xff]
        %v762 = vld [vmem:[%s387 + $0x38] sm:$0xff]
        %v763 = vld [vmem:[%s387 + $0x40] sm:$0xff]
        %v764 = vld [vmem:[%s387 + $0x48] sm:$0xff]
        %v765 = vld [vmem:[%s387 + $0x50] sm:$0xff]
        %v766 = vld [vmem:[%s387 + $0x58] sm:$0xff]
        %v767 = vld [vmem:[%s387 + $0x60] sm:$0xff]
        %v768 = vld [vmem:[%s387 + $0x68] sm:$0xff]
        %v769 = vld [vmem:[%s387 + $0x70] sm:$0xff]
        %v770 = vld [vmem:[%s387 + $0x78] sm:$0xff]
        %v771 = vld [vmem:[%s387 + $0x80] sm:$0xff]
        %v772 = vld [vmem:[%s387 + $0x88] sm:$0xff]
        %v773 = vld [vmem:[%s387 + $0x90] sm:$0xff]
        %v774 = vld [vmem:[%s387 + $0x98] sm:$0xff]
        %v775 = vld [vmem:[%s387 + $0xa0] sm:$0xff]
        %v776 = vld [vmem:[%s387 + $0xa8] sm:$0xff]
        %v777 = vld [vmem:[%s387 + $0xb0] sm:$0xff]
        %v778 = vld [vmem:[%s387 + $0xb8] sm:$0xff]
        %v779 = vld [vmem:[%s387 + $0xc0] sm:$0xff]
        %v780 = vld [vmem:[%s387 + $0xc8] sm:$0xff]
        %v781 = vld [vmem:[%s387 + $0xd0] sm:$0xff]
        %v782 = vld [vmem:[%s387 + $0xd8] sm:$0xff]
        %v783 = vld [vmem:[%s387 + $0xe0] sm:$0xff]
        %v784 = vld [vmem:[%s387 + $0xe8] sm:$0xff]
        %v785 = vld [vmem:[%s387 + $0xf0] sm:$0xff]
        %v786 = vld [vmem:[%s387 + $0xf8] sm:$0xff]
        %v787 = vld [vmem:[%s429] sm:$0x1]
        %v789 = vlaneseq
        %v790 = vshrl.u32 %v789, 7
        %v791 = vsub.s32 0, %v790
        %v792 = vrot.slane %v787, %v791
        %794 = vmatprep.subr.mxu0 0.0
        %795 = vmatpush1.msra.mxu0 %v755
        %796 = vmatprep.subr.mxu0 0.0
        %797 = vmatpush1.msra.mxu0 %v756
        %798 = vmatprep.subr.mxu0 0.0
        %799 = vmatpush1.msra.mxu0 %v757
        %800 = vmatprep.subr.mxu0 0.0
        %801 = vmatpush1.msra.mxu0 %v758
        %802 = vmatprep.subr.mxu0 0.0
        %803 = vmatpush1.msra.mxu0 %v759
        %804 = vmatprep.subr.mxu0 0.0
        %805 = vmatpush1.msra.mxu0 %v760
        %806 = vmatprep.subr.mxu0 0.0
        %807 = vmatpush1.msra.mxu0 %v761
        %808 = vmatprep.subr.mxu0 0.0
        %809 = vmatpush1.msra.mxu0 %v762
        %810 = vmatprep.subr.mxu0 0.0
        %811 = vmatpush1.msra.mxu0 %v763
        %812 = vmatprep.subr.mxu0 0.0
        %813 = vmatpush1.msra.mxu0 %v764
        %814 = vmatprep.subr.mxu0 0.0
        %815 = vmatpush1.msra.mxu0 %v765
        %816 = vmatprep.subr.mxu0 0.0
        %817 = vmatpush1.msra.mxu0 %v766
        %818 = vmatprep.subr.mxu0 0.0
        %819 = vmatpush1.msra.mxu0 %v767
        %820 = vmatprep.subr.mxu0 0.0
        %821 = vmatpush1.msra.mxu0 %v768
        %822 = vmatprep.subr.mxu0 0.0
        %823 = vmatpush1.msra.mxu0 %v769
        %824 = vmatprep.subr.mxu0 0.0
        %825 = vmatpush1.msra.mxu0 %v770
        %826 = vmatprep.subr.mxu0 0.0
        %827 = vmatpush1.msra.mxu0 %v771
        %828 = vmatprep.subr.mxu0 0.0
        %829 = vmatpush1.msra.mxu0 %v772
        %830 = vmatprep.subr.mxu0 0.0
        %831 = vmatpush1.msra.mxu0 %v773
        %832 = vmatprep.subr.mxu0 0.0
        %833 = vmatpush1.msra.mxu0 %v774
        %834 = vmatprep.subr.mxu0 0.0
        %835 = vmatpush1.msra.mxu0 %v775
        %836 = vmatprep.subr.mxu0 0.0
        %837 = vmatpush1.msra.mxu0 %v776
        %838 = vmatprep.subr.mxu0 0.0
        %839 = vmatpush1.msra.mxu0 %v777
        %840 = vmatprep.subr.mxu0 0.0
        %841 = vmatpush1.msra.mxu0 %v778
        %842 = vmatprep.subr.mxu0 0.0
        %843 = vmatpush1.msra.mxu0 %v779
        %844 = vmatprep.subr.mxu0 0.0
        %845 = vmatpush1.msra.mxu0 %v780
        %846 = vmatprep.subr.mxu0 0.0
        %847 = vmatpush1.msra.mxu0 %v781
        %848 = vmatprep.subr.mxu0 0.0
        %849 = vmatpush1.msra.mxu0 %v782
        %850 = vmatprep.subr.mxu0 0.0
        %851 = vmatpush1.msra.mxu0 %v783
        %852 = vmatprep.subr.mxu0 0.0
        %853 = vmatpush1.msra.mxu0 %v784
        %854 = vmatprep.subr.mxu0 0.0
        %855 = vmatpush1.msra.mxu0 %v785
        %856 = vmatprep.subr.mxu0 0.0
        %857 = vmatpush1.msra.mxu0 %v786
        %858 = vmatprep.mubr.f32.mxu0 %v748
        %859 = vmatmul.mubr.f32.gmra.mrb[0].mxu0 %v747
        %v860 = vpop.f32.mrb[0].mxu0
        %v861 = vadd.f32 %v792, %v860
        %v862 = vpop.f32.mrb[0].mxu0
        %863 = vmatprep.mubr.f32.mxu0 %v750
        %864 = vmatmul.mubr.f32.gmra.mrb[0].mxu0 %v749
        %v865 = vpop.f32.mrb[0].mxu0
        %v866 = vadd.f32 %v792, %v865
        %v867 = vpop.f32.mrb[0].mxu0
        %868 = vmatprep.mubr.f32.mxu0 %v752
        %869 = vmatmul.mubr.f32.gmra.mrb[0].mxu0 %v751
        %v870 = vpop.f32.mrb[0].mxu0
        %v871 = vadd.f32 %v792, %v870
        %v872 = vpop.f32.mrb[0].mxu0
        %873 = vmatprep.mubr.f32.mxu0 %v754
        %874 = vmatmul.mubr.f32.gmra.mrb[0].mxu0 %v753
        %v875 = vpop.f32.mrb[0].mxu0
        %v876 = vadd.f32 %v792, %v875
        %v877 = vpop.f32.mrb[0].mxu0
        %878 = vdwg.mxu0
        %v879 = vmin.f32 %v861, 0.0
        %v880 = vmin.f32 %v866, 0.0
        %v881 = vmin.f32 %v871, 0.0
        %v882 = vmin.f32 %v876, 0.0
        %v883 = vmul.f32 %v879, 1.442695
        %v884 = vpow.pop %v883
        %v885 = vmul.f32 %v880, 1.442695
        %v886 = vpow.pop %v885
        %v887 = vmul.f32 %v881, 1.442695
        %v888 = vpow.pop %v887
        %v889 = vmul.f32 %v882, 1.442695
        %v890 = vpow.pop %v889
        %v891 = vsub.f32 %v884, 1.0
        %v892 = vsub.f32 %v886, 1.0
        %v893 = vsub.f32 %v888, 1.0
        %v894 = vsub.f32 %v890, 1.0
        %v895 = vmul.f32 %v891, 1.7580993
        %v896 = vmul.f32 %v892, 1.7580993
        %v897 = vmul.f32 %v893, 1.7580993
        %v898 = vmul.f32 %v894, 1.7580993
        %vm899 = vcmp.gt.f32.partialorder %v861, 0.0
        %vm900 = vcmp.gt.f32.partialorder %v866, 0.0
        %vm901 = vcmp.gt.f32.partialorder %v871, 0.0
        %vm902 = vcmp.gt.f32.partialorder %v876, 0.0
        %v903 = vmul.f32 %v861, 1.050701
        %v904 = vmul.f32 %v866, 1.050701
        %v905 = vmul.f32 %v871, 1.050701
        %v906 = vmul.f32 %v876, 1.050701
        %v907 = vsel %vm899, %v903, %v895
        %v908 = vsel %vm900, %v904, %v896
        %v909 = vsel %vm901, %v905, %v897
        %v910 = vsel %vm902, %v906, %v898
        %911 = vst [vmem:[%s419] sm:$0xff] %v907
        %912 = vst [vmem:[%s419 + $0x8] sm:$0xff] %v908
        %913 = vst [vmem:[%s419 + $0x10] sm:$0xff] %v909
        %914 = vst [vmem:[%s419 + $0x18] sm:$0xff] %v910
        %s915 = sand.u32 %s158, 1
        %s916 = sand.u32 %s158, 1
        %s917 = smul.addr %s916, 32
        %s918 = scalar_lea.vmem [#allocation3], %s917
        // Predicated region
        $region79: #{mixer_layer_pallas.1} parent=73 // pred_check
          %p919 = pneg %p168
        $region80: #{mixer_layer_pallas.1} parent=73 // pred_check_branch
          %921 = sbr.rel (%p919) target = $region82
        $region81: #{mixer_layer_pallas.1} parent=73 // pred_region
          %s922 = smul.u32 2, %s21
          %s923 = smul.addr %s922, 4
          %s924 = sadd.s32 %s20, %s923
          %s925 = smul.addr %s924, 8
          %s926 = scalar_lea.vmem %s5, %s925
          // Predicated region
          $region83: #{mixer_layer_pallas.1} parent=81 // pred_check
            _
          $region84: #{mixer_layer_pallas.1} parent=81 // pred_check_branch
            %928 = sbr.rel (0) target = $region86
          $region85: #{mixer_layer_pallas.1} parent=81 // pred_region
            // Predicated region
            $region87: #{mixer_layer_pallas.1} parent=85 // pred_check
              _
            $region88: #{mixer_layer_pallas.1} parent=85 // pred_check_branch
              %930 = sbr.rel (0) target = $region90
            $region89: #{mixer_layer_pallas.1} parent=85 // pred_region
              // Predicated region
              $region102: #{mixer_layer_pallas.1} parent=89 // pred_check
                _
              $region103: #{mixer_layer_pallas.1} parent=89 // pred_check_branch
                %951 = sbr.rel (0) target = $region105
              $region104: #{mixer_layer_pallas.1} parent=89 // pred_region
                loop: start=0, step=1, limit=1
                $region106: #{mixer_layer_pallas.1} parent=104 // loop_pre_header
                  _
                $region107: #{mixer_layer_pallas.1} parent=104 // loop_header
                  %s953 = sphi 0, %s957
                  %p954 = scmp.ge.s32.totalorder %s953, 1
                  %s958 = sphi %s918, %s918
                  %s959 = sphi %s926, %s926
                $region108: #{mixer_layer_pallas.1} parent=104 // loop_header_branch
                  %956 = sbr.rel (%p954) target = $region112
                $region109: #{mixer_layer_pallas.1} parent=104 // loop_body
                  %v960 = vld [vmem:[%s958] sm:$0xff]
                  %961 = vst [vmem:[%s959] sm:$0xff] %v960
                  %v962 = vld [vmem:[%s958 + $0x8] sm:$0xff]
                  %963 = vst [vmem:[%s959 + $0x10] sm:$0xff] %v962
                  %v964 = vld [vmem:[%s958 + $0x10] sm:$0xff]
                  %965 = vst [vmem:[%s959 + $0x20] sm:$0xff] %v964
                  %v966 = vld [vmem:[%s958 + $0x18] sm:$0xff]
                  %967 = vst [vmem:[%s959 + $0x30] sm:$0xff] %v966
                $region110: #{mixer_layer_pallas.1} parent=104 // loop_footer
                  %s957 = sadd.s32 1, %s953
                $region111: #{mixer_layer_pallas.1} parent=104 // loop_footer_branch
                  %952 = sbr.rel target = $region107
                $region112: #{mixer_layer_pallas.1} parent=104 // loop_exit
                  _
              $region105: #{mixer_layer_pallas.1} parent=89 // pred_fallthru
                _
              // Predicated region
              $region113: #{mixer_layer_pallas.1} parent=89 // pred_check
                _
              $region114: #{mixer_layer_pallas.1} parent=89 // pred_check_branch
                %969 = sbr.rel target = $region116
              $region115: #{mixer_layer_pallas.1} parent=89 // pred_region
                _
              $region116: #{mixer_layer_pallas.1} parent=89 // pred_fallthru
                _
            $region90: #{mixer_layer_pallas.1} parent=85 // pred_fallthru
              _
            // Predicated region
            $region91: #{mixer_layer_pallas.1} parent=85 // pred_check
              _
            $region92: #{mixer_layer_pallas.1} parent=85 // pred_check_branch
              %932 = sbr.rel target = $region94
            $region93: #{mixer_layer_pallas.1} parent=85 // pred_region
              loop: start=0, step=1, limit=1
              $region95: #{mixer_layer_pallas.1} parent=93 // loop_pre_header
                _
              $region96: #{mixer_layer_pallas.1} parent=93 // loop_header
                %s935 = sphi 0, %s939
                %p936 = scmp.ge.s32.totalorder %s935, 1
                %s940 = sphi %s918, %s918
                %s941 = sphi %s926, %s926
              $region97: #{mixer_layer_pallas.1} parent=93 // loop_header_branch
                %938 = sbr.rel (%p936) target = $region101
              $region98: #{mixer_layer_pallas.1} parent=93 // loop_body
                %v942 = vld [vmem:[%s940] sm:$0xff]
                %943 = vst [vmem:[%s941] sm:$0xff] %v942
                %v944 = vld [vmem:[%s940 + $0x8] sm:$0xff]
                %945 = vst [vmem:[%s941 + $0x10] sm:$0xff] %v944
                %v946 = vld [vmem:[%s940 + $0x10] sm:$0xff]
                %947 = vst [vmem:[%s941 + $0x20] sm:$0xff] %v946
                %v948 = vld [vmem:[%s940 + $0x18] sm:$0xff]
                %949 = vst [vmem:[%s941 + $0x30] sm:$0xff] %v948
              $region99: #{mixer_layer_pallas.1} parent=93 // loop_footer
                %s939 = sadd.s32 1, %s935
              $region100: #{mixer_layer_pallas.1} parent=93 // loop_footer_branch
                %934 = sbr.rel target = $region96
              $region101: #{mixer_layer_pallas.1} parent=93 // loop_exit
                _
            $region94: #{mixer_layer_pallas.1} parent=85 // pred_fallthru
              _
          $region86: #{mixer_layer_pallas.1} parent=81 // pred_fallthru
            _
          %970 = vnop
        $region82: #{mixer_layer_pallas.1} parent=73 // pred_fallthru
          _
      $region74: #{mixer_layer_pallas.1} parent=5 // pred_fallthru
        _
      %p971 = scmp.le.s32.totalorder 2, %s11
      // Predicated region
      $region117: #{mixer_layer_pallas.1} parent=5 // pred_check
        %p972 = pneg %p971
      $region118: #{mixer_layer_pallas.1} parent=5 // pred_check_branch
        %974 = sbr.rel (%p972) target = $region120
      $region119: #{mixer_layer_pallas.1} parent=5 // pred_region
        %s975 = ssub.s32 %s11, 2
        // Predicated region
        $region121: #{mixer_layer_pallas.1} parent=119 // pred_check
          %p976 = pneg %p174
        $region122: #{mixer_layer_pallas.1} parent=119 // pred_check_branch
          %978 = sbr.rel (%p976) target = $region124
        $region123: #{mixer_layer_pallas.1} parent=119 // pred_region
          %s979 = sand.u32 %s159, 1
          %s980 = sand.u32 %s159, 1
          %s981 = smul.addr %s980, 32
          %s982 = scalar_lea.vmem [#allocation3], %s981
        $region124: #{mixer_layer_pallas.1} parent=119 // pred_fallthru
          _
      $region120: #{mixer_layer_pallas.1} parent=5 // pred_fallthru
        _
    $region6: #{mixer_layer_pallas.1} parent=1 // loop_footer
      %s15 = sadd.s32 1, %s11
    $region7: #{mixer_layer_pallas.1} parent=1 // loop_footer_branch
      %10 = sbr.rel target = $region3
    $region8: #{mixer_layer_pallas.1} parent=1 // loop_exit
      _

</llo_original>
